<compile_context>
chip_gen: v6e
topology: v6e:2x2x1
jax: 0.10.0
libtpu: 0.0.40
codegen_flags: <defaults>
</compile_context>

<pallas_src>
import functools
import math

import jax
import jax.numpy as jnp
from jax.experimental import pallas as pl
from jax.experimental.pallas import tpu as pltpu


def _cross_encoding_kernel(q_ref, a_ref, w0t_ref, b0_ref, w1t_ref, b1_ref,
                           eq_ref, ea_ref, *, use_bf16_matmul=False):
    Bt, Lq, d = q_ref.shape
    _, La, _ = a_ref.shape

    Qb = q_ref[...]            # (Bt, Lq, d)
    Ab = a_ref[...]            # (Bt, La, d)
    w0t = w0t_ref[...]         # (d, d)   -- already scaled by 1/sqrt(d_orig)
    w1t = w1t_ref[...]         # (d, d)
    b0 = b0_ref[...]           # (1, d)   -- already scaled by 1/sqrt(d_orig)
    b1 = b1_ref[...]           # (1, d)

    in_dt = Qb.dtype
    # Matmul operand dtype: optionally drop f32 inputs to bf16 for the MXU
    # (f32 accumulation is kept via preferred_element_type everywhere).
    mm_dt = jnp.bfloat16 if (use_bf16_matmul and in_dt == jnp.float32) else in_dt

    # ---- Fused linear projections ------------------------------------------
    # Collapse (batch, seq) into one tall M axis so each projection is a single
    # big MXU matmul (weights are batch-invariant). Falls back to a batched dot
    # only if the sequence length is not sublane-aligned (static Python branch;
    # prefer padding L to a multiple of 8 in the wrapper).
    if Lq % 8 == 0:
        query = (jnp.dot(Qb.astype(mm_dt).reshape(Bt * Lq, d), w0t.astype(mm_dt),
                         preferred_element_type=jnp.float32) + b0
                 ).reshape(Bt, Lq, d)
    else:
        query = jnp.einsum('bld,de->ble', Qb.astype(mm_dt), w0t.astype(mm_dt),
                           preferred_element_type=jnp.float32) + b0
    if La % 8 == 0:
        key = (jnp.dot(Ab.astype(mm_dt).reshape(Bt * La, d), w1t.astype(mm_dt),
                       preferred_element_type=jnp.float32) + b1
               ).reshape(Bt, La, d)
    else:
        key = jnp.einsum('bld,de->ble', Ab.astype(mm_dt), w1t.astype(mm_dt),
                         preferred_element_type=jnp.float32) + b1

    # ---- Scaled dot-product scores (scale pre-folded into query path) -------
    s = jnp.einsum('bqd,bkd->bqk', query.astype(mm_dt), key.astype(mm_dt),
                   preferred_element_type=jnp.float32)      # (Bt, Lq, La)

    # ---- Dual softmax, deferred normalization, no explicit transpose --------
    # Row softmax (over keys) and column softmax (over queries, kept in
    # s-orientation). Separate maxes per direction for numerical robustness.
    row_max = jnp.max(s, axis=-1, keepdims=True)             # (Bt, Lq, 1)
    row_e = jnp.exp(s - row_max)                             # (Bt, Lq, La)
    row_inv = pl.reciprocal(jnp.sum(row_e, axis=-1, keepdims=True),
                            approx=True)                     # (Bt, Lq, 1), EUP

    col_max = jnp.max(s, axis=-2, keepdims=True)             # (Bt, 1, La)
    col_e = jnp.exp(s - col_max)                             # (Bt, Lq, La)
    col_inv = jnp.expand_dims(
        pl.reciprocal(jnp.sum(col_e, axis=1), approx=True), -1)  # (Bt, La, 1)

    # ---- Cross encodings (normalize AFTER the matmuls, on (L, d) tiles) -----
    eq = jnp.einsum('bqk,bkd->bqd', row_e.astype(mm_dt), Ab.astype(mm_dt),
                    preferred_element_type=jnp.float32) * row_inv
    # ea = kq @ Q expressed as a transposed contraction over the q axis
    # (no XLU vxpose of the (Lq, La) tile; MXU handles the transposed operand).
    ea = jnp.einsum('bqk,bqd->bkd', col_e.astype(mm_dt), Qb.astype(mm_dt),
                    preferred_element_type=jnp.float32) * col_inv

    eq_ref[...] = eq.astype(eq_ref.dtype)
    ea_ref[...] = ea.astype(ea_ref.dtype)


def cross_encoding(Q, A, W0, b0, W1, b1, *, block_b=None, use_bf16_matmul=False,
                   vmem_budget_bytes=40 * 1024 * 1024):
    """Q: (B, Lq, d), A: (B, La, d). W*: (d, d) torch-Linear layout, b*: (d,)."""
    B, Lq, d = Q.shape
    Ba, La, da = A.shape
    assert Ba == B and da == d

    # ---- Lane-dense feature axis: zero-pad d to a multiple of 128. ----------
    # Exact: padded W rows/cols and biases are zero, so padded query/key/eq/ea
    # columns are identically zero and are sliced off below.
    d_pad = ((d + 127) // 128) * 128
    pad = d_pad - d
    if pad:
        Qp = jnp.pad(Q, ((0, 0), (0, 0), (0, pad)))
        Ap = jnp.pad(A, ((0, 0), (0, 0), (0, pad)))
        W0p = jnp.pad(W0, ((0, pad), (0, pad)))
        W1p = jnp.pad(W1, ((0, pad), (0, pad)))
        b0p = jnp.pad(b0, ((0, pad),))
        b1p = jnp.pad(b1, ((0, pad),))
    else:
        Qp, Ap, W0p, W1p, b0p, b1p = Q, A, W0, W1, b0, b1

    # Fold the 1/sqrt(d) score scaling (original d!) into the query projection.
    scale = 1.0 / math.sqrt(d)
    W0t = (W0p.T * scale).astype(Q.dtype)
    b0r = (b0p * scale).reshape(1, d_pad).astype(Q.dtype)
    W1t = W1p.T.astype(A.dtype)
    b1r = b1p.reshape(1, d_pad).astype(A.dtype)

    itemsize = jnp.dtype(Q.dtype).itemsize

    def vmem_bytes(bb):
        # in + out tiles, each double-buffered by the BlockSpec pipeline.
        tiles = 4 * itemsize * bb * (Lq + La) * d_pad
        # live f32 temporaries: query/key, s/row_e/col_e, eq/ea accumulators.
        temps = 4 * bb * (2 * (Lq + La) * d_pad + 3 * Lq * La)
        weights = 2 * 2 * itemsize * (d_pad * d_pad + d_pad)
        return int(1.25 * (tiles + temps) + weights)     # 25% layout/spill slack

    # ---- block_b: fill the MXU, respect VMEM, keep >=2 parallel grid steps. --
    if block_b is None:
        target_rows = 512          # M per projection; multiple of 256 for v6e/v7x
        block_b = max(1, target_rows // max(min(Lq, La), 1))
        if B >= 2:
            block_b = min(block_b, (B + 1) // 2)   # >=2 steps -> both v7x TCs busy
    block_b = max(1, min(block_b, B))
    while block_b > 1 and vmem_bytes(block_b) > vmem_budget_bytes:
        block_b -= 1
    while B % block_b != 0:        # pick a divisor of B
        block_b -= 1
    grid = (B // block_b,)

    vmem_limit = int(min(48 * 1024 * 1024,
                         max(32 * 1024 * 1024, 2 * vmem_bytes(block_b))))

    flops = int(2 * B * ((Lq + La) * d_pad * d_pad + 3 * Lq * La * d_pad))
    transcendentals = int(2 * B * Lq * La)
    bytes_accessed = int(itemsize * (2 * B * (Lq + La) * d_pad
                                     + 2 * d_pad * d_pad + 2 * d_pad))

    out_shapes = (
        jax.ShapeDtypeStruct((B, Lq, d_pad), Q.dtype),
        jax.ShapeDtypeStruct((B, La, d_pad), Q.dtype),
    )

    kernel = functools.partial(_cross_encoding_kernel,
                               use_bf16_matmul=use_bf16_matmul)

    # Note: weight/bias BlockSpecs have constant index_maps; Pallas skips the
    # redundant re-fetch across grid steps. (pipeline_mode=pl.Buffered(1) would
    # additionally drop their second VMEM buffer — only meaningful at d>=512.)
    eq, ea = pl.pallas_call(
        kernel,
        out_shape=out_shapes,
        grid_spec=pltpu.PrefetchScalarGridSpec(
            num_scalar_prefetch=0,
            grid=grid,
            in_specs=[
                pl.BlockSpec((block_b, Lq, d_pad), lambda b: (b, 0, 0)),  # Q
                pl.BlockSpec((block_b, La, d_pad), lambda b: (b, 0, 0)),  # A
                pl.BlockSpec((d_pad, d_pad),       lambda b: (0, 0)),     # W0^T (scaled)
                pl.BlockSpec((1, d_pad),           lambda b: (0, 0)),     # b0   (scaled)
                pl.BlockSpec((d_pad, d_pad),       lambda b: (0, 0)),     # W1^T
                pl.BlockSpec((1, d_pad),           lambda b: (0, 0)),     # b1
            ],
            out_specs=[
                pl.BlockSpec((block_b, Lq, d_pad), lambda b: (b, 0, 0)),  # eq
                pl.BlockSpec((block_b, La, d_pad), lambda b: (b, 0, 0)),  # ea
            ],
        ),
        compiler_params=pltpu.CompilerParams(
            dimension_semantics=("parallel",),
            vmem_limit_bytes=vmem_limit),
        cost_estimate=pl.CostEstimate(
            flops=flops,
            transcendentals=transcendentals,
            bytes_accessed=bytes_accessed),
    )(Qp, Ap, W0t, b0r, W1t, b1r)

    if pad:
        eq = eq[..., :d]
        ea = ea[..., :d]
    return eq, ea


def cross_encoding_ref(Q, A, W0, b0, W1, b1):
    """Plain-JAX reference matching the PyTorch forward (eval mode)."""
    query = jnp.einsum("bld,ed->ble", Q, W0) + b0
    key = jnp.einsum("bld,ed->ble", A, W1) + b1
    d = Q.shape[-1]
    s = jnp.einsum("bqd,bkd->bqk", query, key) / math.sqrt(d)
    qk = jax.nn.softmax(s, axis=-1)
    kq = jax.nn.softmax(jnp.swapaxes(s, -1, -2), axis=-1)
    eq = jnp.einsum("bqk,bkd->bqd", qk, A)
    ea = jnp.einsum("bkq,bqd->bkd", kq, Q)
    return eq, ea


if __name__ == "__main__":
    B, Lq, La, d_model = 2, 8, 8, 32
    key = jax.random.PRNGKey(0)
    kq_, ka_, kw0, kb0, kw1, kb1 = jax.random.split(key, 6)

    Q = jax.random.normal(kq_, (B, Lq, d_model), dtype=jnp.float32)
    A = jax.random.normal(ka_, (B, La, d_model), dtype=jnp.float32)

    # Deterministic parameter init (uniform like torch Linear default bounds).
    bound = 1.0 / math.sqrt(d_model)
    W0 = jax.random.uniform(kw0, (d_model, d_model), jnp.float32, -bound, bound)
    b0 = jax.random.uniform(kb0, (d_model,), jnp.float32, -bound, bound)
    W1 = jax.random.uniform(kw1, (d_model, d_model), jnp.float32, -bound, bound)
    b1 = jax.random.uniform(kb1, (d_model,), jnp.float32, -bound, bound)

    eq, ea = cross_encoding(Q, A, W0, b0, W1, b1)
    jax.block_until_ready((eq, ea))

    eq_ref, ea_ref = cross_encoding_ref(Q, A, W0, b0, W1, b1)
    # Tolerances account for the approximate EUP reciprocal used in softmax
    # normalization (relative error ~1e-4) on top of f32 rounding.
    assert jnp.allclose(eq, eq_ref, atol=2e-3, rtol=2e-3), "eq mismatch"
    assert jnp.allclose(ea, ea_ref, atol=2e-3, rtol=2e-3), "ea mismatch"

    print("KERNEL_OK")
</pallas_src>

<mosaic_0001>
module attributes {stable_mosaic.version = 11 : i64} {
  func.func @_cross_encoding_kernel(%arg0: i32, %arg1: memref<1x8x128xf32, #tpu.memory_space<vmem>>, %arg2: memref<1x8x128xf32, #tpu.memory_space<vmem>>, %arg3: memref<128x128xf32, #tpu.memory_space<vmem>>, %arg4: memref<1x128xf32, #tpu.memory_space<vmem>>, %arg5: memref<128x128xf32, #tpu.memory_space<vmem>>, %arg6: memref<1x128xf32, #tpu.memory_space<vmem>>, %arg7: memref<1x8x128xf32, #tpu.memory_space<vmem>>, %arg8: memref<1x8x128xf32, #tpu.memory_space<vmem>>) attributes {dimension_semantics = [#tpu.dimension_semantics<parallel>], iteration_bounds = array<i64: 2>, scalar_prefetch = 0 : i64, scratch_operands = 0 : i64, tpu.core_type = #tpu.core_type<tc>, window_params = [{transform_indices = @transform_0, window_bounds = array<i64: 1, 8, 128>}, {transform_indices = @transform_1, window_bounds = array<i64: 1, 8, 128>}, {pipeline_mode = #tpu.pipeline_mode<synchronous>, transform_indices = @transform_2, window_bounds = array<i64: 128, 128>}, {pipeline_mode = #tpu.pipeline_mode<synchronous>, transform_indices = @transform_3, window_bounds = array<i64: 1, 128>}, {pipeline_mode = #tpu.pipeline_mode<synchronous>, transform_indices = @transform_4, window_bounds = array<i64: 128, 128>}, {pipeline_mode = #tpu.pipeline_mode<synchronous>, transform_indices = @transform_5, window_bounds = array<i64: 1, 128>}, {transform_indices = @transform_6, window_bounds = array<i64: 1, 8, 128>}, {transform_indices = @transform_7, window_bounds = array<i64: 1, 8, 128>}]} {
    %c0 = arith.constant 0 : index
    %c0_0 = arith.constant 0 : index
    %c0_1 = arith.constant 0 : index
    %0 = vector.load %arg1[%c0, %c0_0, %c0_1] : memref<1x8x128xf32, #tpu.memory_space<vmem>>, vector<1x8x128xf32>
    %c0_2 = arith.constant 0 : index
    %c0_3 = arith.constant 0 : index
    %c0_4 = arith.constant 0 : index
    %1 = vector.load %arg2[%c0_2, %c0_3, %c0_4] : memref<1x8x128xf32, #tpu.memory_space<vmem>>, vector<1x8x128xf32>
    %c0_5 = arith.constant 0 : index
    %c0_6 = arith.constant 0 : index
    %2 = vector.load %arg3[%c0_5, %c0_6] : memref<128x128xf32, #tpu.memory_space<vmem>>, vector<128x128xf32>
    %c0_7 = arith.constant 0 : index
    %c0_8 = arith.constant 0 : index
    %3 = vector.load %arg5[%c0_7, %c0_8] : memref<128x128xf32, #tpu.memory_space<vmem>>, vector<128x128xf32>
    %c0_9 = arith.constant 0 : index
    %c0_10 = arith.constant 0 : index
    %4 = vector.load %arg4[%c0_9, %c0_10] : memref<1x128xf32, #tpu.memory_space<vmem>>, vector<1x128xf32>
    %c0_11 = arith.constant 0 : index
    %c0_12 = arith.constant 0 : index
    %5 = vector.load %arg6[%c0_11, %c0_12] : memref<1x128xf32, #tpu.memory_space<vmem>>, vector<1x128xf32>
    %6 = vector.shape_cast %0 : vector<1x8x128xf32> to vector<8x128xf32>
    %cst = arith.constant dense<0.000000e+00> : vector<8x128xf32>
    %7 = tpu.matmul %6, %2, %cst {dimension_numbers = #tpu.dot_dimension_numbers<[1], [0], [0], [1], [0, 0, 1, 1], [], []>} : vector<8x128xf32>, vector<128x128xf32>, vector<8x128xf32> -> vector<8x128xf32>
    %8 = vector.broadcast %4 : vector<1x128xf32> to vector<8x128xf32>
    %9 = arith.addf %7, %8 : vector<8x128xf32>
    %10 = vector.shape_cast %9 : vector<8x128xf32> to vector<1x8x128xf32>
    %11 = vector.shape_cast %1 : vector<1x8x128xf32> to vector<8x128xf32>
    %cst_13 = arith.constant dense<0.000000e+00> : vector<8x128xf32>
    %12 = tpu.matmul %11, %3, %cst_13 {dimension_numbers = #tpu.dot_dimension_numbers<[1], [0], [0], [1], [0, 0, 1, 1], [], []>} : vector<8x128xf32>, vector<128x128xf32>, vector<8x128xf32> -> vector<8x128xf32>
    %13 = vector.broadcast %5 : vector<1x128xf32> to vector<8x128xf32>
    %14 = arith.addf %12, %13 : vector<8x128xf32>
    %15 = vector.shape_cast %14 : vector<8x128xf32> to vector<1x8x128xf32>
    "tpu.trace_start"() <{level = 10 : i32, message = "bqd,bkd->bqk"}> : () -> ()
    %cst_14 = arith.constant dense<0.000000e+00> : vector<1x8x8xf32>
    %16 = tpu.matmul %10, %15, %cst_14 {dimension_numbers = #tpu.dot_dimension_numbers<[2], [2], [1], [1], [0, 0, 0, 1, 1, 1], [0], [0]>} : vector<1x8x128xf32>, vector<1x8x128xf32>, vector<1x8x8xf32> -> vector<1x8x8xf32>
    "tpu.trace_stop"() : () -> ()
    %cst_15 = arith.constant dense<0xFF800000> : vector<1x8xf32>
    %17 = vector.multi_reduction <maximumf>, %16, %cst_15 [2] : vector<1x8x8xf32> to vector<1x8xf32>
    %18 = vector.shape_cast %17 : vector<1x8xf32> to vector<1x8x1xf32>
    %19 = vector.broadcast %18 : vector<1x8x1xf32> to vector<1x8x8xf32>
    %20 = arith.subf %16, %19 : vector<1x8x8xf32>
    %21 = math.exp %20 : vector<1x8x8xf32>
    %cst_16 = arith.constant dense<0.000000e+00> : vector<1x8xf32>
    %22 = vector.multi_reduction <add>, %21, %cst_16 [2] : vector<1x8x8xf32> to vector<1x8xf32>
    %23 = vector.shape_cast %22 : vector<1x8xf32> to vector<1x8x1xf32>
    %24 = tpu.reciprocal %23 {approx = true} : vector<1x8x1xf32> -> vector<1x8x1xf32>
    %cst_17 = arith.constant dense<0xFF800000> : vector<1x8xf32>
    %25 = vector.multi_reduction <maximumf>, %16, %cst_17 [1] : vector<1x8x8xf32> to vector<1x8xf32>
    %26 = vector.shape_cast %25 : vector<1x8xf32> to vector<1x1x8xf32>
    %27 = vector.broadcast %26 : vector<1x1x8xf32> to vector<1x8x8xf32>
    %28 = arith.subf %16, %27 : vector<1x8x8xf32>
    %29 = math.exp %28 : vector<1x8x8xf32>
    %cst_18 = arith.constant dense<0.000000e+00> : vector<1x8xf32>
    %30 = vector.multi_reduction <add>, %29, %cst_18 [1] : vector<1x8x8xf32> to vector<1x8xf32>
    %31 = tpu.reciprocal %30 {approx = true} : vector<1x8xf32> -> vector<1x8xf32>
    %32 = vector.shape_cast %31 : vector<1x8xf32> to vector<1x8x1xf32>
    "tpu.trace_start"() <{level = 10 : i32, message = "bqk,bkd->bqd"}> : () -> ()
    %cst_19 = arith.constant dense<0.000000e+00> : vector<1x8x128xf32>
    %33 = tpu.matmul %21, %1, %cst_19 {dimension_numbers = #tpu.dot_dimension_numbers<[2], [1], [1], [2], [0, 0, 0, 1, 1, 2], [0], [0]>} : vector<1x8x8xf32>, vector<1x8x128xf32>, vector<1x8x128xf32> -> vector<1x8x128xf32>
    "tpu.trace_stop"() : () -> ()
    %34 = vector.broadcast %24 : vector<1x8x1xf32> to vector<1x8x128xf32>
    %35 = arith.mulf %33, %34 : vector<1x8x128xf32>
    "tpu.trace_start"() <{level = 10 : i32, message = "bqk,bqd->bkd"}> : () -> ()
    %cst_20 = arith.constant dense<0.000000e+00> : vector<1x8x128xf32>
    %36 = tpu.matmul %29, %0, %cst_20 {dimension_numbers = #tpu.dot_dimension_numbers<[1], [1], [2], [2], [0, 0, 0, 2, 1, 2], [0], [0]>} : vector<1x8x8xf32>, vector<1x8x128xf32>, vector<1x8x128xf32> -> vector<1x8x128xf32>
    "tpu.trace_stop"() : () -> ()
    %37 = vector.broadcast %32 : vector<1x8x1xf32> to vector<1x8x128xf32>
    %38 = arith.mulf %36, %37 : vector<1x8x128xf32>
    %c0_21 = arith.constant 0 : index
    %c0_22 = arith.constant 0 : index
    %c0_23 = arith.constant 0 : index
    %39 = vector.load %arg7[%c0_21, %c0_22, %c0_23] : memref<1x8x128xf32, #tpu.memory_space<vmem>>, vector<1x8x128xf32>
    tpu.vector_store %arg7[%c0_21, %c0_22, %c0_23], %35 {strides = array<i32>} : memref<1x8x128xf32, #tpu.memory_space<vmem>>, vector<1x8x128xf32>,
    %c0_24 = arith.constant 0 : index
    %c0_25 = arith.constant 0 : index
    %c0_26 = arith.constant 0 : index
    %40 = vector.load %arg8[%c0_24, %c0_25, %c0_26] : memref<1x8x128xf32, #tpu.memory_space<vmem>>, vector<1x8x128xf32>
    tpu.vector_store %arg8[%c0_24, %c0_25, %c0_26], %38 {strides = array<i32>} : memref<1x8x128xf32, #tpu.memory_space<vmem>>, vector<1x8x128xf32>,
    return
  }
  func.func @transform_0(%arg0: i32) -> (i32, i32, i32) {
    %c0_i32 = arith.constant 0 : i32
    %c0_i32_0 = arith.constant 0 : i32
    %c0_i32_1 = arith.constant 0 : i32
    return %arg0, %c0_i32, %c0_i32_0 : i32, i32, i32
  }
  func.func @transform_1(%arg0: i32) -> (i32, i32, i32) {
    %c0_i32 = arith.constant 0 : i32
    %c0_i32_0 = arith.constant 0 : i32
    %c0_i32_1 = arith.constant 0 : i32
    return %arg0, %c0_i32, %c0_i32_0 : i32, i32, i32
  }
  func.func @transform_2(%arg0: i32) -> (i32, i32) {
    %c0_i32 = arith.constant 0 : i32
    %c0_i32_0 = arith.constant 0 : i32
    %c0_i32_1 = arith.constant 0 : i32
    return %c0_i32, %c0_i32_0 : i32, i32
  }
  func.func @transform_3(%arg0: i32) -> (i32, i32) {
    %c0_i32 = arith.constant 0 : i32
    %c0_i32_0 = arith.constant 0 : i32
    %c0_i32_1 = arith.constant 0 : i32
    return %c0_i32, %c0_i32_0 : i32, i32
  }
  func.func @transform_4(%arg0: i32) -> (i32, i32) {
    %c0_i32 = arith.constant 0 : i32
    %c0_i32_0 = arith.constant 0 : i32
    %c0_i32_1 = arith.constant 0 : i32
    return %c0_i32, %c0_i32_0 : i32, i32
  }
  func.func @transform_5(%arg0: i32) -> (i32, i32) {
    %c0_i32 = arith.constant 0 : i32
    %c0_i32_0 = arith.constant 0 : i32
    %c0_i32_1 = arith.constant 0 : i32
    return %c0_i32, %c0_i32_0 : i32, i32
  }
  func.func @transform_6(%arg0: i32) -> (i32, i32, i32) {
    %c0_i32 = arith.constant 0 : i32
    %c0_i32_0 = arith.constant 0 : i32
    %c0_i32_1 = arith.constant 0 : i32
    return %arg0, %c0_i32, %c0_i32_0 : i32, i32, i32
  }
  func.func @transform_7(%arg0: i32) -> (i32, i32, i32) {
    %c0_i32 = arith.constant 0 : i32
    %c0_i32_0 = arith.constant 0 : i32
    %c0_i32_1 = arith.constant 0 : i32
    return %arg0, %c0_i32, %c0_i32_0 : i32, i32, i32
  }
}

</mosaic_0001>

<llo_original>
// kernel: tpu_custom_call.1
$region0: #{tpu_custom_call.1}
  #allocation0 [shape = 'u32[]', space=smem, size = 0x4, offset = 0x4, fixed_abs, tag = 'smem constant byte address 0x4 - core index']
  #allocation1 [shape = 'u32[144,128]{1,0:T(1,128)}', space=vmem, size = 0x12000, scoped, tag = 'internal scratch']
  %s0 = inlined_call_operand.hbm [shape: f32[2,8,128], index: 0, kind: input, shape index: {}]
  %s1 = inlined_call_operand.hbm [shape: f32[2,8,128], index: 1, kind: input, shape index: {}]
  %s2 = inlined_call_operand.hbm [shape: f32[128,128], index: 2, kind: input, shape index: {}]
  %s3 = inlined_call_operand.vmem [shape: f32[1,128], index: 3, kind: input, shape index: {}]
  %s4 = inlined_call_operand.hbm [shape: f32[128,128], index: 4, kind: input, shape index: {}]
  %s5 = inlined_call_operand.vmem [shape: f32[1,128], index: 5, kind: input, shape index: {}]
  %s6 = inlined_call_operand.hbm [shape: f32[2,8,128], index: 6, kind: output, shape index: {0}]
  %s7 = inlined_call_operand.hbm [shape: f32[2,8,128], index: 7, kind: output, shape index: {1}]
  %8 = xla_tuple %s6, %s7
  %s9 = sld [smem:[#allocation0]]
  $region81: #{tpu_custom_call.1} parent=0
    _
  %s11 = ssub.s32 1, %s9
  %s12 = scalar_select 0, %s11, %s9
  $region1: #{tpu_custom_call.1} parent=0
    #allocation2 [shape = 'u8[8192]{0}', space=vmem, size = 0x2000, scoped, tag = 'input window, operand 0']
    #allocation3 [shape = 's32[2]{0}', space=sflag, size = 0x8, scoped, tag = 'scoped memory for tpu_custom_call.1']
    #allocation4 [shape = 's32[2]{0}', space=sflag, size = 0x8, scoped, tag = 'scoped memory for tpu_custom_call.1']
    #allocation5 [shape = 'u8[8192]{0}', space=vmem, size = 0x2000, scoped, tag = 'input window, operand 1']
    #allocation6 [shape = 's32[2]{0}', space=sflag, size = 0x8, scoped, tag = 'scoped memory for tpu_custom_call.1']
    #allocation7 [shape = 'u8[65536]{0}', space=vmem, size = 0x10000, scoped, tag = 'input window, operand 2, single buffered']
    #allocation8 [shape = 'u8[65536]{0}', space=vmem, size = 0x10000, scoped, tag = 'input window, operand 4, single buffered']
    #allocation9 [shape = 's32[1]{0}', space=sflag, size = 0x4, scoped, tag = 'scoped memory for tpu_custom_call.1']
    #allocation10 [shape = 'u8[8192]{0}', space=vmem, size = 0x2000, scoped, tag = 'output window, operand 0']
    #allocation11 [shape = 'u8[8192]{0}', space=vmem, size = 0x2000, scoped, tag = 'output window, operand 1']
    #allocation12 [shape = 's32[2]{0}', space=sflag, size = 0x8, scoped, tag = 'scoped memory for tpu_custom_call.1']
    %13 = vsyncpa [#allocation3], 0
    %s14 = scalar_lea.sflag [#allocation3], 1
    %15 = vsyncpa %s14, 0
    %16 = vsyncpa [#allocation6], 0
    %s17 = scalar_lea.sflag [#allocation6], 1
    %18 = vsyncpa %s17, 0
    %19 = vsyncpa [#allocation9], 0
    %20 = vsyncpa [#allocation4], 0
    %s21 = scalar_lea.sflag [#allocation4], 1
    %22 = vsyncpa %s21, 0
    %23 = vsyncpa [#allocation12], 0
    %s24 = scalar_lea.sflag [#allocation12], 1
    %25 = vsyncpa %s24, 0
    loop: start=0, step=1, limit=4
    $region2: #{tpu_custom_call.1} parent=1 // loop_pre_header
      _
    $region3: #{tpu_custom_call.1} parent=1 // loop_header
      %s27 = sphi 0, %s31
      %p28 = scmp.ge.s32.totalorder %s27, 4
      %s37 = sphi 0, %s39
      %s40 = sphi 0, %s37
      %s41 = sphi 0, %s40
      %s57 = sphi 0, %s41
      %s63 = sphi 0, %s65
      %s66 = sphi 0, %s63
      %s67 = sphi 0, %s66
      %s83 = sphi 0, %s67
      %s87 = sphi 0, %s87
      %s89 = sphi 0, %s87
      %s90 = sphi 0, %s89
      %s104 = sphi 0, %s90
      %s108 = sphi 0, %s108
      %s110 = sphi 0, %s108
      %s111 = sphi 0, %s110
      %s125 = sphi 0, %s111
      %s129 = sphi 0, %s129
      %s131 = sphi 0, %s129
      %s132 = sphi 0, %s131
      %s146 = sphi 0, %s132
      %s150 = sphi 0, %s150
      %s152 = sphi 0, %s150
      %s153 = sphi 0, %s152
      %s167 = sphi 0, %s153
      %s173 = sphi 0, %s175
      %s176 = sphi 0, %s173
      %s177 = sphi 0, %s176
      %s193 = sphi 0, %s177
      %s199 = sphi 0, %s201
      %s202 = sphi 0, %s199
      %s203 = sphi 0, %s202
      %s219 = sphi 0, %s203
    $region4: #{tpu_custom_call.1} parent=1 // loop_header_branch
      %30 = sbr.rel (%p28) target = $region8
    $region5: #{tpu_custom_call.1} parent=1 // loop_body
      %s32 = ssub.s32 %s27, 1
      %s33 = ssub.s32 %s27, 2
      %s34 = sadd.s32 %s27, 1
      %s35 = ssub.s32 %s27, %s34
      %p36 = scmp.eq.s32.totalorder %s35, 0
      %s38 = sadd.s32 %s37, 1
      %s39 = scalar_select %p36, %s37, %s38
      %p42 = pneg %p36
      %p43 = scmp.eq.s32.totalorder %s27, 1
      %p44 = por %p42, %p43
      %p45 = scmp.ne.s32.totalorder %s37, %s40
      %p46 = scmp.eq.s32.totalorder %s27, 0
      %p47 = por %p45, %p46
      %p48 = scmp.ne.s32.totalorder %s37, %s40
      %p49 = scmp.eq.s32.totalorder %s32, 1
      %p50 = por %p48, %p49
      %p51 = scmp.ne.s32.totalorder %s40, %s41
      %p52 = scmp.eq.s32.totalorder %s32, 0
      %p53 = por %p51, %p52
      %p54 = scmp.ne.s32.totalorder %s40, %s41
      %p55 = scmp.eq.s32.totalorder %s33, 1
      %p56 = por %p54, %p55
      %p58 = scmp.ne.s32.totalorder %s41, %s57
      %p59 = scmp.eq.s32.totalorder %s33, 0
      %p60 = por %p58, %p59
      %s61 = ssub.s32 %s27, %s34
      %p62 = scmp.eq.s32.totalorder %s61, 0
      %s64 = sadd.s32 %s63, 1
      %s65 = scalar_select %p62, %s63, %s64
      %p68 = pneg %p62
      %p69 = scmp.eq.s32.totalorder %s27, 1
      %p70 = por %p68, %p69
      %p71 = scmp.ne.s32.totalorder %s63, %s66
      %p72 = scmp.eq.s32.totalorder %s27, 0
      %p73 = por %p71, %p72
      %p74 = scmp.ne.s32.totalorder %s63, %s66
      %p75 = scmp.eq.s32.totalorder %s32, 1
      %p76 = por %p74, %p75
      %p77 = scmp.ne.s32.totalorder %s66, %s67
      %p78 = scmp.eq.s32.totalorder %s32, 0
      %p79 = por %p77, %p78
      %p80 = scmp.ne.s32.totalorder %s66, %s67
      %p81 = scmp.eq.s32.totalorder %s33, 1
      %p82 = por %p80, %p81
      %p84 = scmp.ne.s32.totalorder %s67, %s83
      %p85 = scmp.eq.s32.totalorder %s33, 0
      %p86 = por %p84, %p85
      %s88 = sadd.s32 %s87, 1
      %p91 = scmp.eq.s32.totalorder %s27, 1
      %p92 = scmp.ne.s32.totalorder %s87, %s89
      %p93 = scmp.eq.s32.totalorder %s27, 0
      %p94 = por %p92, %p93
      %p95 = scmp.ne.s32.totalorder %s87, %s89
      %p96 = scmp.eq.s32.totalorder %s32, 1
      %p97 = por %p95, %p96
      %p98 = scmp.ne.s32.totalorder %s89, %s90
      %p99 = scmp.eq.s32.totalorder %s32, 0
      %p100 = por %p98, %p99
      %p101 = scmp.ne.s32.totalorder %s89, %s90
      %p102 = scmp.eq.s32.totalorder %s33, 1
      %p103 = por %p101, %p102
      %p105 = scmp.ne.s32.totalorder %s90, %s104
      %p106 = scmp.eq.s32.totalorder %s33, 0
      %p107 = por %p105, %p106
      %s109 = sadd.s32 %s108, 1
      %p112 = scmp.eq.s32.totalorder %s27, 1
      %p113 = scmp.ne.s32.totalorder %s108, %s110
      %p114 = scmp.eq.s32.totalorder %s27, 0
      %p115 = por %p113, %p114
      %p116 = scmp.ne.s32.totalorder %s108, %s110
      %p117 = scmp.eq.s32.totalorder %s32, 1
      %p118 = por %p116, %p117
      %p119 = scmp.ne.s32.totalorder %s110, %s111
      %p120 = scmp.eq.s32.totalorder %s32, 0
      %p121 = por %p119, %p120
      %p122 = scmp.ne.s32.totalorder %s110, %s111
      %p123 = scmp.eq.s32.totalorder %s33, 1
      %p124 = por %p122, %p123
      %p126 = scmp.ne.s32.totalorder %s111, %s125
      %p127 = scmp.eq.s32.totalorder %s33, 0
      %p128 = por %p126, %p127
      %s130 = sadd.s32 %s129, 1
      %p133 = scmp.eq.s32.totalorder %s27, 1
      %p134 = scmp.ne.s32.totalorder %s129, %s131
      %p135 = scmp.eq.s32.totalorder %s27, 0
      %p136 = por %p134, %p135
      %p137 = scmp.ne.s32.totalorder %s129, %s131
      %p138 = scmp.eq.s32.totalorder %s32, 1
      %p139 = por %p137, %p138
      %p140 = scmp.ne.s32.totalorder %s131, %s132
      %p141 = scmp.eq.s32.totalorder %s32, 0
      %p142 = por %p140, %p141
      %p143 = scmp.ne.s32.totalorder %s131, %s132
      %p144 = scmp.eq.s32.totalorder %s33, 1
      %p145 = por %p143, %p144
      %p147 = scmp.ne.s32.totalorder %s132, %s146
      %p148 = scmp.eq.s32.totalorder %s33, 0
      %p149 = por %p147, %p148
      %s151 = sadd.s32 %s150, 1
      %p154 = scmp.eq.s32.totalorder %s27, 1
      %p155 = scmp.ne.s32.totalorder %s150, %s152
      %p156 = scmp.eq.s32.totalorder %s27, 0
      %p157 = por %p155, %p156
      %p158 = scmp.ne.s32.totalorder %s150, %s152
      %p159 = scmp.eq.s32.totalorder %s32, 1
      %p160 = por %p158, %p159
      %p161 = scmp.ne.s32.totalorder %s152, %s153
      %p162 = scmp.eq.s32.totalorder %s32, 0
      %p163 = por %p161, %p162
      %p164 = scmp.ne.s32.totalorder %s152, %s153
      %p165 = scmp.eq.s32.totalorder %s33, 1
      %p166 = por %p164, %p165
      %p168 = scmp.ne.s32.totalorder %s153, %s167
      %p169 = scmp.eq.s32.totalorder %s33, 0
      %p170 = por %p168, %p169
      %s171 = ssub.s32 %s27, %s34
      %p172 = scmp.eq.s32.totalorder %s171, 0
      %s174 = sadd.s32 %s173, 1
      %s175 = scalar_select %p172, %s173, %s174
      %p178 = pneg %p172
      %p179 = scmp.eq.s32.totalorder %s27, 1
      %p180 = por %p178, %p179
      %p181 = scmp.ne.s32.totalorder %s173, %s176
      %p182 = scmp.eq.s32.totalorder %s27, 0
      %p183 = por %p181, %p182
      %p184 = scmp.ne.s32.totalorder %s173, %s176
      %p185 = scmp.eq.s32.totalorder %s32, 1
      %p186 = por %p184, %p185
      %p187 = scmp.ne.s32.totalorder %s176, %s177
      %p188 = scmp.eq.s32.totalorder %s32, 0
      %p189 = por %p187, %p188
      %p190 = scmp.ne.s32.totalorder %s176, %s177
      %p191 = scmp.eq.s32.totalorder %s33, 1
      %p192 = por %p190, %p191
      %p194 = scmp.ne.s32.totalorder %s177, %s193
      %p195 = scmp.eq.s32.totalorder %s33, 0
      %p196 = por %p194, %p195
      %s197 = ssub.s32 %s27, %s34
      %p198 = scmp.eq.s32.totalorder %s197, 0
      %s200 = sadd.s32 %s199, 1
      %s201 = scalar_select %p198, %s199, %s200
      %p204 = pneg %p198
      %p205 = scmp.eq.s32.totalorder %s27, 1
      %p206 = por %p204, %p205
      %p207 = scmp.ne.s32.totalorder %s199, %s202
      %p208 = scmp.eq.s32.totalorder %s27, 0
      %p209 = por %p207, %p208
      %p210 = scmp.ne.s32.totalorder %s199, %s202
      %p211 = scmp.eq.s32.totalorder %s32, 1
      %p212 = por %p210, %p211
      %p213 = scmp.ne.s32.totalorder %s202, %s203
      %p214 = scmp.eq.s32.totalorder %s32, 0
      %p215 = por %p213, %p214
      %p216 = scmp.ne.s32.totalorder %s202, %s203
      %p217 = scmp.eq.s32.totalorder %s33, 1
      %p218 = por %p216, %p217
      %p220 = scmp.ne.s32.totalorder %s203, %s219
      %p221 = scmp.eq.s32.totalorder %s33, 0
      %p222 = por %p220, %p221
      %p223 = scmp.le.s32.totalorder 1, %s27
      %p224 = scmp.lt.s32.totalorder %s27, 3
      %p225 = pnand %p223, %p224
      %p226 = pneg %p225
      // Predicated region
      $region9: #{tpu_custom_call.1} parent=5 // pred_check
        _
      $region10: #{tpu_custom_call.1} parent=5 // pred_check_branch
        %228 = sbr.rel (%p225) target = $region12
      $region11: #{tpu_custom_call.1} parent=5 // pred_region
        %s229 = ssub.s32 %s27, 1
        // Predicated region
        $region13: #{tpu_custom_call.1} parent=11 // pred_check
          %p230 = pneg %p100
        $region14: #{tpu_custom_call.1} parent=11 // pred_check_branch
          %232 = sbr.rel (%p230) target = $region16
        $region15: #{tpu_custom_call.1} parent=11 // pred_region
          %s234 = ssub.s32 2048, 2048
          %235 = vsyncadd [#allocation6], %s234
          %s236 = sshll.u32 [#allocation7], 4
          %s237 = int_to_ptr.vmem [resolvable:$true] %s236
          %242 = dma.hbm_to_vmem [thread:$0]  %s2, 2048, %s237, [#allocation6], 128, 128, 8
        $region16: #{tpu_custom_call.1} parent=11 // pred_fallthru
          _
        // Predicated region
        $region17: #{tpu_custom_call.1} parent=11 // pred_check
          %p243 = pneg %p121
        $region18: #{tpu_custom_call.1} parent=11 // pred_check_branch
          %245 = sbr.rel (%p243) target = $region20
        $region19: #{tpu_custom_call.1} parent=11 // pred_region
          _
        $region20: #{tpu_custom_call.1} parent=11 // pred_fallthru
          _
        // Predicated region
        $region21: #{tpu_custom_call.1} parent=11 // pred_check
          %p246 = pneg %p142
        $region22: #{tpu_custom_call.1} parent=11 // pred_check_branch
          %248 = sbr.rel (%p246) target = $region24
        $region23: #{tpu_custom_call.1} parent=11 // pred_region
          %s250 = ssub.s32 2048, 2048
          %251 = vsyncadd [#allocation9], %s250
          %s252 = sshll.u32 [#allocation8], 4
          %s253 = int_to_ptr.vmem [resolvable:$true] %s252
          %258 = dma.hbm_to_vmem [thread:$0]  %s4, 2048, %s253, [#allocation9], 128, 128, 8
        $region24: #{tpu_custom_call.1} parent=11 // pred_fallthru
          _
        // Predicated region
        $region25: #{tpu_custom_call.1} parent=11 // pred_check
          %p259 = pneg %p163
        $region26: #{tpu_custom_call.1} parent=11 // pred_check_branch
          %261 = sbr.rel (%p259) target = $region28
        $region27: #{tpu_custom_call.1} parent=11 // pred_region
          _
        $region28: #{tpu_custom_call.1} parent=11 // pred_fallthru
          _
      $region12: #{tpu_custom_call.1} parent=5 // pred_fallthru
        _
      %p262 = scmp.lt.s32.totalorder %s27, 2
      // Predicated region
      $region29: #{tpu_custom_call.1} parent=5 // pred_check
        %p263 = pneg %p262
      $region30: #{tpu_custom_call.1} parent=5 // pred_check_branch
        %265 = sbr.rel (%p263) target = $region32
      $region31: #{tpu_custom_call.1} parent=5 // pred_region
        // Predicated region
        $region33: #{tpu_custom_call.1} parent=31 // pred_check
          %p266 = pneg %p47
        $region34: #{tpu_custom_call.1} parent=31 // pred_check_branch
          %268 = sbr.rel (%p266) target = $region36
        $region35: #{tpu_custom_call.1} parent=31 // pred_region
          %s269 = sand.u32 %s37, 1
          %s270 = scalar_lea.sflag [#allocation3], %s269
          %s271 = sand.u32 %s37, 1
          %s272 = smul.addr %s271, 8
          %s273 = scalar_lea.vmem [#allocation2], %s272
          %s275 = ssub.s32 128, 128
          %276 = vsyncadd %s270, %s275
          %s277 = smul.addr %s27, 128
          %s278 = scalar_lea.hbm %s0, %s277
          %s280 = sshll.u32 %s273, 4
          %s281 = int_to_ptr.vmem [resolvable:$true] %s280
          %283 = dma.hbm_to_vmem [thread:$0]  %s278, 128, %s281, %s270
        $region36: #{tpu_custom_call.1} parent=31 // pred_fallthru
          _
        // Predicated region
        $region37: #{tpu_custom_call.1} parent=31 // pred_check
          %p284 = pneg %p73
        $region38: #{tpu_custom_call.1} parent=31 // pred_check_branch
          %286 = sbr.rel (%p284) target = $region40
        $region39: #{tpu_custom_call.1} parent=31 // pred_region
          %s287 = sand.u32 %s27, 1
          %s288 = scalar_lea.sflag [#allocation6], %s287
          %s289 = sand.u32 %s63, 1
          %s290 = smul.addr %s289, 8
          %s291 = scalar_lea.vmem [#allocation5], %s290
          %s293 = ssub.s32 128, 128
          %294 = vsyncadd %s288, %s293
          %s295 = smul.addr %s27, 128
          %s296 = scalar_lea.hbm %s1, %s295
          %s298 = sshll.u32 %s291, 4
          %s299 = int_to_ptr.vmem [resolvable:$true] %s298
          %301 = dma.hbm_to_vmem [thread:$0]  %s296, 128, %s299, %s288
        $region40: #{tpu_custom_call.1} parent=31 // pred_fallthru
          _
      $region32: #{tpu_custom_call.1} parent=5 // pred_fallthru
        _
      %p302 = scmp.le.s32.totalorder 1, %s27
      %p303 = scmp.lt.s32.totalorder %s27, 3
      %p304 = pnand %p302, %p303
      %p305 = pneg %p304
      // Predicated region
      $region41: #{tpu_custom_call.1} parent=5 // pred_check
        _
      $region42: #{tpu_custom_call.1} parent=5 // pred_check_branch
        %307 = sbr.rel (%p304) target = $region44
      $region43: #{tpu_custom_call.1} parent=5 // pred_region
        %s308 = ssub.s32 %s27, 1
        %s309 = sand.u32 %s40, 1
        %s310 = scalar_lea.sflag [#allocation3], %s309
        %s311 = sand.u32 %s40, 1
        %s312 = smul.addr %s311, 8
        %s313 = scalar_lea.vmem [#allocation2], %s312
        // Predicated region
        $region45: #{tpu_custom_call.1} parent=43 // pred_check
          %p314 = pneg %p53
        $region46: #{tpu_custom_call.1} parent=43 // pred_check_branch
          %316 = sbr.rel (%p314) target = $region48
        $region47: #{tpu_custom_call.1} parent=43 // pred_region
          %317 = dma.done %s310, 128
        $region48: #{tpu_custom_call.1} parent=43 // pred_fallthru
          _
        %s318 = sand.u32 %s32, 1
        %s319 = scalar_lea.sflag [#allocation6], %s318
        %s320 = sand.u32 %s66, 1
        %s321 = smul.addr %s320, 8
        %s322 = scalar_lea.vmem [#allocation5], %s321
        // Predicated region
        $region49: #{tpu_custom_call.1} parent=43 // pred_check
          %p323 = pneg %p79
        $region50: #{tpu_custom_call.1} parent=43 // pred_check_branch
          %325 = sbr.rel (%p323) target = $region52
        $region51: #{tpu_custom_call.1} parent=43 // pred_region
          %326 = dma.done %s319, 128
        $region52: #{tpu_custom_call.1} parent=43 // pred_fallthru
          _
        // Predicated region
        $region53: #{tpu_custom_call.1} parent=43 // pred_check
          %p327 = pneg %p100
        $region54: #{tpu_custom_call.1} parent=43 // pred_check_branch
          %329 = sbr.rel (%p327) target = $region56
        $region55: #{tpu_custom_call.1} parent=43 // pred_region
          %330 = dma.done [#allocation6], 2048
        $region56: #{tpu_custom_call.1} parent=43 // pred_fallthru
          _
        // Predicated region
        $region57: #{tpu_custom_call.1} parent=43 // pred_check
          %p331 = pneg %p142
        $region58: #{tpu_custom_call.1} parent=43 // pred_check_branch
          %333 = sbr.rel (%p331) target = $region60
        $region59: #{tpu_custom_call.1} parent=43 // pred_region
          %334 = dma.done [#allocation9], 2048
        $region60: #{tpu_custom_call.1} parent=43 // pred_fallthru
          _
        %s335 = sand.u32 %s40, 1
        %s336 = scalar_lea.sflag [#allocation3], %s335
        %s337 = sand.u32 %s40, 1
        %s338 = smul.addr %s337, 8
        %s339 = scalar_lea.vmem [#allocation2], %s338
        %p340 = pneg %p53
        %p341 = pneg %p50
        %s342 = sand.u32 %s32, 1
        %s343 = scalar_lea.sflag [#allocation6], %s342
        %s344 = sand.u32 %s66, 1
        %s345 = smul.addr %s344, 8
        %s346 = scalar_lea.vmem [#allocation5], %s345
        %p347 = pneg %p79
        %p348 = pneg %p76
        %p349 = pneg %p100
        %p350 = pneg %p97
        %p351 = pneg %p121
        %p352 = pneg %p118
        %p353 = pneg %p142
        %p354 = pneg %p139
        %p355 = pneg %p163
        %p356 = pneg %p160
        %p357 = pneg %p189
        %p358 = pneg %p186
        %s359 = sand.u32 %s176, 1
        %s360 = scalar_lea.sflag [#allocation4], %s359
        %s361 = sand.u32 %s176, 1
        %s362 = smul.addr %s361, 8
        %s363 = scalar_lea.vmem [#allocation10], %s362
        %p364 = pneg %p215
        %p365 = pneg %p212
        %s366 = sand.u32 %s202, 1
        %s367 = scalar_lea.sflag [#allocation12], %s366
        %s368 = sand.u32 %s202, 1
        %s369 = smul.addr %s368, 8
        %s370 = scalar_lea.vmem [#allocation11], %s369
        %v371 = vld [vmem:[%s313] sm:$0xff]
        %v372 = vld [vmem:[%s322] sm:$0xff]
        %v373 = vld [vmem:[#allocation7] sm:$0xff]
        %v374 = vld [vmem:[#allocation7 + $0x8] sm:$0xff]
        %v375 = vld [vmem:[#allocation7 + $0x10] sm:$0xff]
        %v376 = vld [vmem:[#allocation7 + $0x18] sm:$0xff]
        %v377 = vld [vmem:[#allocation7 + $0x20] sm:$0xff]
        %v378 = vld [vmem:[#allocation7 + $0x28] sm:$0xff]
        %v379 = vld [vmem:[#allocation7 + $0x30] sm:$0xff]
        %v380 = vld [vmem:[#allocation7 + $0x38] sm:$0xff]
        %v381 = vld [vmem:[#allocation7 + $0x40] sm:$0xff]
        %v382 = vld [vmem:[#allocation7 + $0x48] sm:$0xff]
        %v383 = vld [vmem:[#allocation7 + $0x50] sm:$0xff]
        %v384 = vld [vmem:[#allocation7 + $0x58] sm:$0xff]
        %v385 = vld [vmem:[#allocation7 + $0x60] sm:$0xff]
        %v386 = vld [vmem:[#allocation7 + $0x68] sm:$0xff]
        %v387 = vld [vmem:[#allocation7 + $0x70] sm:$0xff]
        %v388 = vld [vmem:[#allocation7 + $0x78] sm:$0xff]
        %v389 = vld [vmem:[#allocation8] sm:$0xff]
        %v390 = vld [vmem:[#allocation8 + $0x8] sm:$0xff]
        %v391 = vld [vmem:[#allocation8 + $0x10] sm:$0xff]
        %v392 = vld [vmem:[#allocation8 + $0x18] sm:$0xff]
        %v393 = vld [vmem:[#allocation8 + $0x20] sm:$0xff]
        %v394 = vld [vmem:[#allocation8 + $0x28] sm:$0xff]
        %v395 = vld [vmem:[#allocation8 + $0x30] sm:$0xff]
        %v396 = vld [vmem:[#allocation8 + $0x38] sm:$0xff]
        %v397 = vld [vmem:[#allocation8 + $0x40] sm:$0xff]
        %v398 = vld [vmem:[#allocation8 + $0x48] sm:$0xff]
        %v399 = vld [vmem:[#allocation8 + $0x50] sm:$0xff]
        %v400 = vld [vmem:[#allocation8 + $0x58] sm:$0xff]
        %v401 = vld [vmem:[#allocation8 + $0x60] sm:$0xff]
        %v402 = vld [vmem:[#allocation8 + $0x68] sm:$0xff]
        %v403 = vld [vmem:[#allocation8 + $0x70] sm:$0xff]
        %v404 = vld [vmem:[#allocation8 + $0x78] sm:$0xff]
        %v405 = vld [vmem:[%s3] sm:$0x1]
        %v406 = vld [vmem:[%s5] sm:$0x1]
        %v408 = vlaneseq
        %v409 = vshrl.u32 %v408, 7
        %v410 = vsub.s32 0, %v409
        %v411 = vrot.slane %v405, %v410
        %413 = vmatprep.subr.mxu0 0.0
        %414 = vmatpush1.msra.mxu0 %v388
        %415 = vmatprep.subr.mxu0 0.0
        %416 = vmatpush1.msra.mxu0 %v387
        %417 = vmatprep.subr.mxu0 0.0
        %418 = vmatpush1.msra.mxu0 %v386
        %419 = vmatprep.subr.mxu0 0.0
        %420 = vmatpush1.msra.mxu0 %v385
        %421 = vmatprep.subr.mxu0 0.0
        %422 = vmatpush1.msra.mxu0 %v384
        %423 = vmatprep.subr.mxu0 0.0
        %424 = vmatpush1.msra.mxu0 %v383
        %425 = vmatprep.subr.mxu0 0.0
        %426 = vmatpush1.msra.mxu0 %v382
        %427 = vmatprep.subr.mxu0 0.0
        %428 = vmatpush1.msra.mxu0 %v381
        %429 = vmatprep.subr.mxu0 0.0
        %430 = vmatpush1.msra.mxu0 %v380
        %431 = vmatprep.subr.mxu0 0.0
        %432 = vmatpush1.msra.mxu0 %v379
        %433 = vmatprep.subr.mxu0 0.0
        %434 = vmatpush1.msra.mxu0 %v378
        %435 = vmatprep.subr.mxu0 0.0
        %436 = vmatpush1.msra.mxu0 %v377
        %437 = vmatprep.subr.mxu0 0.0
        %438 = vmatpush1.msra.mxu0 %v376
        %439 = vmatprep.subr.mxu0 0.0
        %440 = vmatpush1.msra.mxu0 %v375
        %441 = vmatprep.subr.mxu0 0.0
        %442 = vmatpush1.msra.mxu0 %v374
        %443 = vmatprep.subr.mxu0 0.0
        %444 = vmatpush1.msra.mxu0 %v373
        %445 = vmatprep.subr.mxu0 0.0
        %446 = vmatpush2.msra.mxu0 0.0
        %447 = vmatprep.subr.mxu0 0.0
        %448 = vmatpush2.msra.mxu0 0.0
        %449 = vmatprep.subr.mxu0 0.0
        %450 = vmatpush2.msra.mxu0 0.0
        %451 = vmatprep.subr.mxu0 0.0
        %452 = vmatpush2.msra.mxu0 0.0
        %453 = vmatprep.subr.mxu0 0.0
        %454 = vmatpush2.msra.mxu0 0.0
        %455 = vmatprep.subr.mxu0 0.0
        %456 = vmatpush2.msra.mxu0 0.0
        %457 = vmatprep.subr.mxu0 0.0
        %458 = vmatpush2.msra.mxu0 0.0
        %459 = vmatprep.subr.mxu0 0.0
        %460 = vmatpush2.msra.mxu0 0.0
        %461 = vmatprep.subr.mxu0 0.0
        %462 = vmatpush2.msra.mxu0 0.0
        %463 = vmatprep.subr.mxu0 0.0
        %464 = vmatpush2.msra.mxu0 0.0
        %465 = vmatprep.subr.mxu0 0.0
        %466 = vmatpush2.msra.mxu0 0.0
        %467 = vmatprep.subr.mxu0 0.0
        %468 = vmatpush2.msra.mxu0 0.0
        %469 = vmatprep.subr.mxu0 0.0
        %470 = vmatpush2.msra.mxu0 0.0
        %471 = vmatprep.subr.mxu0 0.0
        %472 = vmatpush2.msra.mxu0 0.0
        %473 = vmatprep.subr.mxu0 0.0
        %474 = vmatpush2.msra.mxu0 0.0
        %475 = vmatprep.subr.mxu0 0.0
        %476 = vmatpush2.msra.mxu0 0.0
        %477 = vmatprep.mubr.f32.mxu0 0.0
        %478 = vmatmul.mubr.f32.gmra.mxu0 %v371
        %v479 = vpop.f32.mrf.mxu0
        %v480 = vadd.f32 %v411, %v479
        %v481 = vpop.f32.mrf.mxu0
        %482 = vdwg.mxu0
        %v484 = vlaneseq
        %v485 = vshrl.u32 %v484, 7
        %v486 = vsub.s32 0, %v485
        %v487 = vrot.slane %v406, %v486
        %489 = vmatprep.subr.mxu0 0.0
        %490 = vmatpush1.msra.mxu0 %v404
        %491 = vmatprep.subr.mxu0 0.0
        %492 = vmatpush1.msra.mxu0 %v403
        %493 = vmatprep.subr.mxu0 0.0
        %494 = vmatpush1.msra.mxu0 %v402
        %495 = vmatprep.subr.mxu0 0.0
        %496 = vmatpush1.msra.mxu0 %v401
        %497 = vmatprep.subr.mxu0 0.0
        %498 = vmatpush1.msra.mxu0 %v400
        %499 = vmatprep.subr.mxu0 0.0
        %500 = vmatpush1.msra.mxu0 %v399
        %501 = vmatprep.subr.mxu0 0.0
        %502 = vmatpush1.msra.mxu0 %v398
        %503 = vmatprep.subr.mxu0 0.0
        %504 = vmatpush1.msra.mxu0 %v397
        %505 = vmatprep.subr.mxu0 0.0
        %506 = vmatpush1.msra.mxu0 %v396
        %507 = vmatprep.subr.mxu0 0.0
        %508 = vmatpush1.msra.mxu0 %v395
        %509 = vmatprep.subr.mxu0 0.0
        %510 = vmatpush1.msra.mxu0 %v394
        %511 = vmatprep.subr.mxu0 0.0
        %512 = vmatpush1.msra.mxu0 %v393
        %513 = vmatprep.subr.mxu0 0.0
        %514 = vmatpush1.msra.mxu0 %v392
        %515 = vmatprep.subr.mxu0 0.0
        %516 = vmatpush1.msra.mxu0 %v391
        %517 = vmatprep.subr.mxu0 0.0
        %518 = vmatpush1.msra.mxu0 %v390
        %519 = vmatprep.subr.mxu0 0.0
        %520 = vmatpush1.msra.mxu0 %v389
        %521 = vmatprep.subr.mxu0 0.0
        %522 = vmatpush2.msra.mxu0 0.0
        %523 = vmatprep.subr.mxu0 0.0
        %524 = vmatpush2.msra.mxu0 0.0
        %525 = vmatprep.subr.mxu0 0.0
        %526 = vmatpush2.msra.mxu0 0.0
        %527 = vmatprep.subr.mxu0 0.0
        %528 = vmatpush2.msra.mxu0 0.0
        %529 = vmatprep.subr.mxu0 0.0
        %530 = vmatpush2.msra.mxu0 0.0
        %531 = vmatprep.subr.mxu0 0.0
        %532 = vmatpush2.msra.mxu0 0.0
        %533 = vmatprep.subr.mxu0 0.0
        %534 = vmatpush2.msra.mxu0 0.0
        %535 = vmatprep.subr.mxu0 0.0
        %536 = vmatpush2.msra.mxu0 0.0
        %537 = vmatprep.subr.mxu0 0.0
        %538 = vmatpush2.msra.mxu0 0.0
        %539 = vmatprep.subr.mxu0 0.0
        %540 = vmatpush2.msra.mxu0 0.0
        %541 = vmatprep.subr.mxu0 0.0
        %542 = vmatpush2.msra.mxu0 0.0
        %543 = vmatprep.subr.mxu0 0.0
        %544 = vmatpush2.msra.mxu0 0.0
        %545 = vmatprep.subr.mxu0 0.0
        %546 = vmatpush2.msra.mxu0 0.0
        %547 = vmatprep.subr.mxu0 0.0
        %548 = vmatpush2.msra.mxu0 0.0
        %549 = vmatprep.subr.mxu0 0.0
        %550 = vmatpush2.msra.mxu0 0.0
        %551 = vmatprep.subr.mxu0 0.0
        %552 = vmatpush2.msra.mxu0 0.0
        %553 = vmatprep.mubr.f32.mxu0 0.0
        %554 = vmatmul.mubr.f32.gmra.mxu0 %v372
        %v555 = vpop.f32.mrf.mxu0
        %v556 = vadd.f32 %v487, %v555
        %v557 = vpop.f32.mrf.mxu0
        %558 = vdwg.mxu0
        %559 = vmatprep.subr.mxu0 0.0
        %560 = vmatpush1.xpose.msra.mxu0 0.0
        %561 = vmatprep.subr.mxu0 0.0
        %562 = vmatpush1.xpose.msra.mxu0 0.0
        %563 = vmatprep.subr.mxu0 0.0
        %564 = vmatpush1.xpose.msra.mxu0 0.0
        %565 = vmatprep.subr.mxu0 0.0
        %566 = vmatpush1.xpose.msra.mxu0 0.0
        %567 = vmatprep.subr.mxu0 0.0
        %568 = vmatpush1.xpose.msra.mxu0 0.0
        %569 = vmatprep.subr.mxu0 0.0
        %570 = vmatpush1.xpose.msra.mxu0 0.0
        %571 = vmatprep.subr.mxu0 0.0
        %572 = vmatpush1.xpose.msra.mxu0 0.0
        %573 = vmatprep.subr.mxu0 0.0
        %574 = vmatpush1.xpose.msra.mxu0 0.0
        %575 = vmatprep.subr.mxu0 0.0
        %576 = vmatpush1.xpose.msra.mxu0 0.0
        %577 = vmatprep.subr.mxu0 0.0
        %578 = vmatpush1.xpose.msra.mxu0 0.0
        %579 = vmatprep.subr.mxu0 0.0
        %580 = vmatpush1.xpose.msra.mxu0 0.0
        %581 = vmatprep.subr.mxu0 0.0
        %582 = vmatpush1.xpose.msra.mxu0 0.0
        %583 = vmatprep.subr.mxu0 0.0
        %584 = vmatpush1.xpose.msra.mxu0 0.0
        %585 = vmatprep.subr.mxu0 0.0
        %586 = vmatpush1.xpose.msra.mxu0 0.0
        %587 = vmatprep.subr.mxu0 0.0
        %588 = vmatpush1.xpose.msra.mxu0 0.0
        %589 = vmatprep.subr.mxu0 0.0
        %590 = vmatpush1.xpose.msra.mxu0 %v556
        %591 = vmatprep.subr.mxu0 0.0
        %592 = vmatpush2.xpose.msra.mxu0 0.0
        %593 = vmatprep.subr.mxu0 0.0
        %594 = vmatpush2.xpose.msra.mxu0 0.0
        %595 = vmatprep.subr.mxu0 0.0
        %596 = vmatpush2.xpose.msra.mxu0 0.0
        %597 = vmatprep.subr.mxu0 0.0
        %598 = vmatpush2.xpose.msra.mxu0 0.0
        %599 = vmatprep.subr.mxu0 0.0
        %600 = vmatpush2.xpose.msra.mxu0 0.0
        %601 = vmatprep.subr.mxu0 0.0
        %602 = vmatpush2.xpose.msra.mxu0 0.0
        %603 = vmatprep.subr.mxu0 0.0
        %604 = vmatpush2.xpose.msra.mxu0 0.0
        %605 = vmatprep.subr.mxu0 0.0
        %606 = vmatpush2.xpose.msra.mxu0 0.0
        %607 = vmatprep.subr.mxu0 0.0
        %608 = vmatpush2.xpose.msra.mxu0 0.0
        %609 = vmatprep.subr.mxu0 0.0
        %610 = vmatpush2.xpose.msra.mxu0 0.0
        %611 = vmatprep.subr.mxu0 0.0
        %612 = vmatpush2.xpose.msra.mxu0 0.0
        %613 = vmatprep.subr.mxu0 0.0
        %614 = vmatpush2.xpose.msra.mxu0 0.0
        %615 = vmatprep.subr.mxu0 0.0
        %616 = vmatpush2.xpose.msra.mxu0 0.0
        %617 = vmatprep.subr.mxu0 0.0
        %618 = vmatpush2.xpose.msra.mxu0 0.0
        %619 = vmatprep.subr.mxu0 0.0
        %620 = vmatpush2.xpose.msra.mxu0 0.0
        %621 = vmatprep.subr.mxu0 0.0
        %622 = vmatpush2.xpose.msra.mxu0 0.0
        %623 = vmatprep.mubr.f32.mxu0 0.0
        %624 = vmatmul.mubr.f32.gmra.mxu0 %v480
        %v625 = vpop.f32.mrf.mxu0
        %v626 = vadd.f32 0.0, %v625
        %v627 = vpop.f32.mrf.mxu0
        %628 = vdwg.mxu0
        %vm629 = vcmask 64512
        %v630 = vsel %vm629, %v626, -inf
        %631 = vmax.xlane.f32.xlu0 %v630
        %v632 = vpop.xlane.xlu0 %631
        %v633 = vsub.f32 %v626, %v632
        %v634 = vmul.f32 %v633, 1.442695
        %v635 = vpow.pop %v634
        %v636 = vsel %vm629, %v635, 0.0
        %637 = vadd.xlane.f32.xlu0 %v636
        %v638 = vpop.xlane.xlu0 %637
        %v639 = vrcp.pop %v638
        %v640 = vrot.slane %v630, 4
        %v641 = vmax.f32 %v630, %v640
        %v642 = vrot.slane %v641, 2
        %v643 = vmax.f32 %v641, %v642
        %v644 = vrot.slane %v643, 1
        %v645 = vmax.f32 %v643, %v644
        %v646 = vsub.f32 %v626, %v645
        %v647 = vmul.f32 %v646, 1.442695
        %v648 = vpow.pop %v647
        %v649 = vsel %vm629, %v648, 0.0
        %v650 = vrot.slane %v649, 4
        %v651 = vadd.f32 %v649, %v650
        %v652 = vrot.slane %v651, 2
        %v653 = vadd.f32 %v651, %v652
        %v654 = vrot.slane %v653, 1
        %v655 = vadd.f32 %v653, %v654
        %v656 = vrcp.pop %v655
        %658 = vbcast.lane.b32.xlu0 %v656, 256
        %v659 = vpop.permute.xlu0 %658
        %v661 = vsel %vm629, %v635, 0
        %663 = vmatprep.subr.mxu0 0.0
        %664 = vmatpush1.msra.mxu0 0.0
        %665 = vmatprep.subr.mxu0 0.0
        %666 = vmatpush1.msra.mxu0 0.0
        %667 = vmatprep.subr.mxu0 0.0
        %668 = vmatpush1.msra.mxu0 0.0
        %669 = vmatprep.subr.mxu0 0.0
        %670 = vmatpush1.msra.mxu0 0.0
        %671 = vmatprep.subr.mxu0 0.0
        %672 = vmatpush1.msra.mxu0 0.0
        %673 = vmatprep.subr.mxu0 0.0
        %674 = vmatpush1.msra.mxu0 0.0
        %675 = vmatprep.subr.mxu0 0.0
        %676 = vmatpush1.msra.mxu0 0.0
        %677 = vmatprep.subr.mxu0 0.0
        %678 = vmatpush1.msra.mxu0 0.0
        %679 = vmatprep.subr.mxu0 0.0
        %680 = vmatpush1.msra.mxu0 0.0
        %681 = vmatprep.subr.mxu0 0.0
        %682 = vmatpush1.msra.mxu0 0.0
        %683 = vmatprep.subr.mxu0 0.0
        %684 = vmatpush1.msra.mxu0 0.0
        %685 = vmatprep.subr.mxu0 0.0
        %686 = vmatpush1.msra.mxu0 0.0
        %687 = vmatprep.subr.mxu0 0.0
        %688 = vmatpush1.msra.mxu0 0.0
        %689 = vmatprep.subr.mxu0 0.0
        %690 = vmatpush1.msra.mxu0 0.0
        %691 = vmatprep.subr.mxu0 0.0
        %692 = vmatpush1.msra.mxu0 0.0
        %693 = vmatprep.subr.mxu0 0.0
        %694 = vmatpush1.msra.mxu0 %v372
        %695 = vmatprep.subr.mxu0 0.0
        %696 = vmatpush2.msra.mxu0 0.0
        %697 = vmatprep.subr.mxu0 0.0
        %698 = vmatpush2.msra.mxu0 0.0
        %699 = vmatprep.subr.mxu0 0.0
        %700 = vmatpush2.msra.mxu0 0.0
        %701 = vmatprep.subr.mxu0 0.0
        %702 = vmatpush2.msra.mxu0 0.0
        %703 = vmatprep.subr.mxu0 0.0
        %704 = vmatpush2.msra.mxu0 0.0
        %705 = vmatprep.subr.mxu0 0.0
        %706 = vmatpush2.msra.mxu0 0.0
        %707 = vmatprep.subr.mxu0 0.0
        %708 = vmatpush2.msra.mxu0 0.0
        %709 = vmatprep.subr.mxu0 0.0
        %710 = vmatpush2.msra.mxu0 0.0
        %711 = vmatprep.subr.mxu0 0.0
        %712 = vmatpush2.msra.mxu0 0.0
        %713 = vmatprep.subr.mxu0 0.0
        %714 = vmatpush2.msra.mxu0 0.0
        %715 = vmatprep.subr.mxu0 0.0
        %716 = vmatpush2.msra.mxu0 0.0
        %717 = vmatprep.subr.mxu0 0.0
        %718 = vmatpush2.msra.mxu0 0.0
        %719 = vmatprep.subr.mxu0 0.0
        %720 = vmatpush2.msra.mxu0 0.0
        %721 = vmatprep.subr.mxu0 0.0
        %722 = vmatpush2.msra.mxu0 0.0
        %723 = vmatprep.subr.mxu0 0.0
        %724 = vmatpush2.msra.mxu0 0.0
        %725 = vmatprep.subr.mxu0 0.0
        %726 = vmatpush2.msra.mxu0 0.0
        %727 = vmatprep.mubr.f32.mxu0 0.0
        %728 = vmatmul.mubr.f32.gmra.mxu0 %v661
        %v729 = vpop.f32.mrf.mxu0
        %v730 = vadd.f32 0.0, %v729
        %v731 = vpop.f32.mrf.mxu0
        %732 = vdwg.mxu0
        %v733 = vmul.f32 %v730, %v639
        %734 = vxpose.xlu0.b32.start [1/16] %v648, 128
        %735 = vxpose.xlu0.b32.cont [2/16] 0.0, 128
        %736 = vxpose.xlu0.b32.cont [3/16] 0.0, 128
        %737 = vxpose.xlu0.b32.cont [4/16] 0.0, 128
        %738 = vxpose.xlu0.b32.cont [5/16] 0.0, 128
        %739 = vxpose.xlu0.b32.cont [6/16] 0.0, 128
        %740 = vxpose.xlu0.b32.cont [7/16] 0.0, 128
        %741 = vxpose.xlu0.b32.cont [8/16] 0.0, 128
        %742 = vxpose.xlu0.b32.cont [9/16] 0.0, 128
        %743 = vxpose.xlu0.b32.cont [10/16] 0.0, 128
        %744 = vxpose.xlu0.b32.cont [11/16] 0.0, 128
        %745 = vxpose.xlu0.b32.cont [12/16] 0.0, 128
        %746 = vxpose.xlu0.b32.cont [13/16] 0.0, 128
        %747 = vxpose.xlu0.b32.cont [14/16] 0.0, 128
        %748 = vxpose.xlu0.b32.cont [15/16] 0.0, 128
        %749 = vxpose.xlu0.b32.end [16/16] 0.0, 128
        %v750 = vpop.trf.xlu0
        %v751 = vpop.trf.xlu0
        %v752 = vpop.trf.xlu0
        %v753 = vpop.trf.xlu0
        %v754 = vpop.trf.xlu0
        %v755 = vpop.trf.xlu0
        %v756 = vpop.trf.xlu0
        %v757 = vpop.trf.xlu0
        %v758 = vpop.trf.xlu0
        %v759 = vpop.trf.xlu0
        %v760 = vpop.trf.xlu0
        %v761 = vpop.trf.xlu0
        %v762 = vpop.trf.xlu0
        %v763 = vpop.trf.xlu0
        %v764 = vpop.trf.xlu0
        %v765 = vpop.trf.xlu0
        %v767 = vsel %vm629, %v750, 0
        %769 = vmatprep.subr.mxu0 0.0
        %770 = vmatpush1.msra.mxu0 0.0
        %771 = vmatprep.subr.mxu0 0.0
        %772 = vmatpush1.msra.mxu0 0.0
        %773 = vmatprep.subr.mxu0 0.0
        %774 = vmatpush1.msra.mxu0 0.0
        %775 = vmatprep.subr.mxu0 0.0
        %776 = vmatpush1.msra.mxu0 0.0
        %777 = vmatprep.subr.mxu0 0.0
        %778 = vmatpush1.msra.mxu0 0.0
        %779 = vmatprep.subr.mxu0 0.0
        %780 = vmatpush1.msra.mxu0 0.0
        %781 = vmatprep.subr.mxu0 0.0
        %782 = vmatpush1.msra.mxu0 0.0
        %783 = vmatprep.subr.mxu0 0.0
        %784 = vmatpush1.msra.mxu0 0.0
        %785 = vmatprep.subr.mxu0 0.0
        %786 = vmatpush1.msra.mxu0 0.0
        %787 = vmatprep.subr.mxu0 0.0
        %788 = vmatpush1.msra.mxu0 0.0
        %789 = vmatprep.subr.mxu0 0.0
        %790 = vmatpush1.msra.mxu0 0.0
        %791 = vmatprep.subr.mxu0 0.0
        %792 = vmatpush1.msra.mxu0 0.0
        %793 = vmatprep.subr.mxu0 0.0
        %794 = vmatpush1.msra.mxu0 0.0
        %795 = vmatprep.subr.mxu0 0.0
        %796 = vmatpush1.msra.mxu0 0.0
        %797 = vmatprep.subr.mxu0 0.0
        %798 = vmatpush1.msra.mxu0 0.0
        %799 = vmatprep.subr.mxu0 0.0
        %800 = vmatpush1.msra.mxu0 %v371
        %801 = vmatprep.subr.mxu0 0.0
        %802 = vmatpush2.msra.mxu0 0.0
        %803 = vmatprep.subr.mxu0 0.0
        %804 = vmatpush2.msra.mxu0 0.0
        %805 = vmatprep.subr.mxu0 0.0
        %806 = vmatpush2.msra.mxu0 0.0
        %807 = vmatprep.subr.mxu0 0.0
        %808 = vmatpush2.msra.mxu0 0.0
        %809 = vmatprep.subr.mxu0 0.0
        %810 = vmatpush2.msra.mxu0 0.0
        %811 = vmatprep.subr.mxu0 0.0
        %812 = vmatpush2.msra.mxu0 0.0
        %813 = vmatprep.subr.mxu0 0.0
        %814 = vmatpush2.msra.mxu0 0.0
        %815 = vmatprep.subr.mxu0 0.0
        %816 = vmatpush2.msra.mxu0 0.0
        %817 = vmatprep.subr.mxu0 0.0
        %818 = vmatpush2.msra.mxu0 0.0
        %819 = vmatprep.subr.mxu0 0.0
        %820 = vmatpush2.msra.mxu0 0.0
        %821 = vmatprep.subr.mxu0 0.0
        %822 = vmatpush2.msra.mxu0 0.0
        %823 = vmatprep.subr.mxu0 0.0
        %824 = vmatpush2.msra.mxu0 0.0
        %825 = vmatprep.subr.mxu0 0.0
        %826 = vmatpush2.msra.mxu0 0.0
        %827 = vmatprep.subr.mxu0 0.0
        %828 = vmatpush2.msra.mxu0 0.0
        %829 = vmatprep.subr.mxu0 0.0
        %830 = vmatpush2.msra.mxu0 0.0
        %831 = vmatprep.subr.mxu0 0.0
        %832 = vmatpush2.msra.mxu0 0.0
        %833 = vmatprep.mubr.f32.mxu0 0.0
        %834 = vmatmul.mubr.f32.gmra.mxu0 %v767
        %v835 = vpop.f32.mrf.mxu0
        %v836 = vadd.f32 0.0, %v835
        %v837 = vpop.f32.mrf.mxu0
        %838 = vdwg.mxu0
        %v839 = vmul.f32 %v836, %v659
        %840 = vst [vmem:[%s363] sm:$0xff] %v733
        %841 = vst [vmem:[%s370] sm:$0xff] %v839
        %s842 = sand.u32 %s176, 1
        %s843 = scalar_lea.sflag [#allocation4], %s842
        %s844 = sand.u32 %s176, 1
        %s845 = smul.addr %s844, 8
        %s846 = scalar_lea.vmem [#allocation10], %s845
        %s847 = sand.u32 %s202, 1
        %s848 = scalar_lea.sflag [#allocation12], %s847
        %s849 = sand.u32 %s202, 1
        %s850 = smul.addr %s849, 8
        %s851 = scalar_lea.vmem [#allocation11], %s850
        // Predicated region
        $region61: #{tpu_custom_call.1} parent=43 // pred_check
          %p852 = pneg %p186
        $region62: #{tpu_custom_call.1} parent=43 // pred_check_branch
          %854 = sbr.rel (%p852) target = $region64
        $region63: #{tpu_custom_call.1} parent=43 // pred_region
          %s856 = ssub.s32 128, 128
          %857 = vsyncadd %s843, %s856
          %s858 = smul.addr %s32, 128
          %s859 = scalar_lea.hbm %s6, %s858
          %s861 = sshll.u32 %s846, 4
          %s862 = int_to_ptr.vmem [resolvable:$true] %s861
          %864 = dma.vmem_to_hbm [thread:$0]  %s862, 128, %s859, %s843
        $region64: #{tpu_custom_call.1} parent=43 // pred_fallthru
          _
        // Predicated region
        $region65: #{tpu_custom_call.1} parent=43 // pred_check
          %p865 = pneg %p212
        $region66: #{tpu_custom_call.1} parent=43 // pred_check_branch
          %867 = sbr.rel (%p865) target = $region68
        $region67: #{tpu_custom_call.1} parent=43 // pred_region
          %s869 = ssub.s32 128, 128
          %870 = vsyncadd %s848, %s869
          %s871 = smul.addr %s32, 128
          %s872 = scalar_lea.hbm %s7, %s871
          %s874 = sshll.u32 %s851, 4
          %s875 = int_to_ptr.vmem [resolvable:$true] %s874
          %877 = dma.vmem_to_hbm [thread:$0]  %s875, 128, %s872, %s848
        $region68: #{tpu_custom_call.1} parent=43 // pred_fallthru
          _
      $region44: #{tpu_custom_call.1} parent=5 // pred_fallthru
        _
      %p878 = scmp.le.s32.totalorder 2, %s27
      // Predicated region
      $region69: #{tpu_custom_call.1} parent=5 // pred_check
        %p879 = pneg %p878
      $region70: #{tpu_custom_call.1} parent=5 // pred_check_branch
        %881 = sbr.rel (%p879) target = $region72
      $region71: #{tpu_custom_call.1} parent=5 // pred_region
        %s882 = ssub.s32 %s27, 2
        // Predicated region
        $region73: #{tpu_custom_call.1} parent=71 // pred_check
          %p883 = pneg %p192
        $region74: #{tpu_custom_call.1} parent=71 // pred_check_branch
          %885 = sbr.rel (%p883) target = $region76
        $region75: #{tpu_custom_call.1} parent=71 // pred_region
          %s886 = sand.u32 %s177, 1
          %s887 = scalar_lea.sflag [#allocation4], %s886
          %s888 = sand.u32 %s177, 1
          %s889 = smul.addr %s888, 8
          %s890 = scalar_lea.vmem [#allocation10], %s889
          %891 = dma.done %s887, 128
        $region76: #{tpu_custom_call.1} parent=71 // pred_fallthru
          _
        // Predicated region
        $region77: #{tpu_custom_call.1} parent=71 // pred_check
          %p892 = pneg %p218
        $region78: #{tpu_custom_call.1} parent=71 // pred_check_branch
          %894 = sbr.rel (%p892) target = $region80
        $region79: #{tpu_custom_call.1} parent=71 // pred_region
          %s895 = sand.u32 %s203, 1
          %s896 = scalar_lea.sflag [#allocation12], %s895
          %s897 = sand.u32 %s203, 1
          %s898 = smul.addr %s897, 8
          %s899 = scalar_lea.vmem [#allocation11], %s898
          %900 = dma.done %s896, 128
        $region80: #{tpu_custom_call.1} parent=71 // pred_fallthru
          _
      $region72: #{tpu_custom_call.1} parent=5 // pred_fallthru
        _
    $region6: #{tpu_custom_call.1} parent=1 // loop_footer
      %s31 = sadd.s32 1, %s27
    $region7: #{tpu_custom_call.1} parent=1 // loop_footer_branch
      %26 = sbr.rel target = $region3
    $region8: #{tpu_custom_call.1} parent=1 // loop_exit
      _
    %901 = vsyncpa [#allocation3], 1
    %s902 = scalar_lea.sflag [#allocation3], 1
    %903 = vsyncpa %s902, 1
    %904 = vsyncpa [#allocation6], 1
    %s905 = scalar_lea.sflag [#allocation6], 1
    %906 = vsyncpa %s905, 1
    %907 = vsyncpa [#allocation9], 1
    %908 = vsyncpa [#allocation4], 1
    %s909 = scalar_lea.sflag [#allocation4], 1
    %910 = vsyncpa %s909, 1
    %911 = vsyncpa [#allocation12], 1
    %s912 = scalar_lea.sflag [#allocation12], 1
    %913 = vsyncpa %s912, 1

</llo_original>
